<compile_context>
chip_gen: v5e
topology: v5e:2x2
jax: 0.10.0
libtpu: 0.0.40
codegen_flags: <defaults>
</compile_context>

<pallas_src>
import jax
import jax.numpy as jnp
from jax.experimental import pallas as pl
from jax.experimental.pallas import tpu as pltpu

_SMALL_PLANE_BYTES = 4096      # planes at/below this take the contiguous-slab path
_MAX_UNROLLED_CHANNELS = 256   # bound on the statically unrolled in-VMEM permute
_MIN_PARALLEL_STEPS = 4        # keep >= 2 grid steps per TensorCore (v7x megacore)


def _round_up(x: int, m: int) -> int:
    return (x + m - 1) // m * m


def _cdiv(a: int, b: int) -> int:
    return (a + b - 1) // b


def _dtype_sublanes(itemsize: int) -> int:
    # Packed sublane count per vreg row group: 8 (f32) / 16 (bf16) / 32 (int8).
    return max(8, 32 // max(1, itemsize))


def _vmem_capacity_bytes() -> int:
    try:
        info = pltpu.get_tpu_info()
        for attr in ("vmem_capacity_bytes", "vmem_bytes", "vmem_size_bytes"):
            v = getattr(info, attr, None)
            if v:
                return int(v)
    except Exception:
        pass
    return 64 * 1024 * 1024  # assume the smallest (v7x-class) VMEM if unknown


def _block_budget() -> tuple[int, int]:
    """(max PADDED bytes per block, vmem_limit_bytes) — generation aware."""
    vmem = _vmem_capacity_bytes()
    if vmem <= 96 * 1024 * 1024:
        # v7x-class: 64 MiB / TensorCore.  2 MiB blocks keep 2x(in+out) double
        # buffered copies at ~8 MiB, well inside the scoped limit.
        return 2 * 1024 * 1024, 32 * 1024 * 1024
    # v5e / v6e: 128 MiB VMEM — bigger blocks amortize per-step pipeline overhead.
    return 4 * 1024 * 1024, 64 * 1024 * 1024


def _best_plane_factorization(hw: int, sublanes: int) -> tuple[int, int]:
    """Factor hw = sub * lane maximizing packed (sublane, lane)-tile utilization.

    Score = hw / (round_up(sub, sublanes) * round_up(lane, 128)); ties prefer the
    wider lane (lane-dense stores).  E.g. 56x56 f32 -> (7, 448) (77% vs 44% for the
    old (H, W) fallback); 56x56 bf16 -> (14, 224).
    """
    best_key, best = None, (hw, 1)
    d = 1
    while d * d <= hw:
        if hw % d == 0:
            for lane in {d, hw // d}:
                sub = hw // lane
                padded = _round_up(sub, sublanes) * _round_up(lane, 128)
                key = (hw / padded, lane)
                if best_key is None or key > best_key:
                    best_key, best = key, (sub, lane)
        d += 1
    return best


def _copy_kernel(x_ref, o_ref):
    # DMA-permute path: the shuffle lives entirely in the BlockSpecs (input indexed
    # by group, output scattered over the groups axis), so the body is a plain copy.
    o_ref[...] = x_ref[...]


def _make_slab_permute_kernel(channels: int, groups: int, cpg: int):
    """Contiguous-slab path: permute the channel (sublane) axis inside VMEM."""
    pairs = []
    for c_out in range(channels):
        g, j = c_out % groups, c_out // groups
        pairs.append((c_out, g * cpg + j))

    def kernel(x_ref, o_ref):
        # x_ref / o_ref: (bt, C, H*W) slabs -> both HBM DMAs are large & contiguous.
        # groups/cpg are compile-time constants, so the permute unrolls to static
        # single-channel copies (cheap VPU/ld-st work hidden under the DMAs).
        for c_out, c_in in pairs:
            o_ref[:, pl.ds(c_out, 1), :] = x_ref[:, pl.ds(c_in, 1), :]

    return kernel


def _shuffle_small_plane(x, groups, cpg, max_block, vmem_limit):
    B, C, H, W = x.shape
    HW = H * W
    itemsize = jnp.dtype(x.dtype).itemsize
    s_dt = _dtype_sublanes(itemsize)

    # Padded VMEM footprint of one (C, HW) slab per batch element.
    slab_padded = _round_up(C, s_dt) * _round_up(HW, 128) * itemsize

    # Batch tile: fill the padded-byte budget, but keep >= min(B, 4) grid steps so
    # both v7x TensorCores stay busy on this pure-bandwidth kernel.
    bt = max(1, min(B, max_block // slab_padded))
    min_blocks = min(B, _MIN_PARALLEL_STEPS)
    bt = max(1, min(bt, _cdiv(B, min_blocks)))
    grid = (_cdiv(B, bt),)  # cdiv: ragged last block handled by Pallas

    x3 = x.reshape(B, C, HW)  # free contiguous view of NCHW
    out3 = pl.pallas_call(
        _make_slab_permute_kernel(C, groups, cpg),
        out_shape=jax.ShapeDtypeStruct((B, C, HW), x.dtype),
        grid=grid,
        in_specs=[pl.BlockSpec((bt, C, HW), lambda b: (b, 0, 0))],
        out_specs=pl.BlockSpec((bt, C, HW), lambda b: (b, 0, 0)),
        compiler_params=pltpu.CompilerParams(
            dimension_semantics=("parallel",),
            vmem_limit_bytes=vmem_limit,
        ),
        cost_estimate=pl.CostEstimate(
            flops=0, transcendentals=0,
            bytes_accessed=int(2 * x.size * itemsize)),
    )(x3)
    return out3.reshape(B, C, H, W)


def _shuffle_dma_permute(x, groups, cpg, max_block, vmem_limit):
    B, C, H, W = x.shape
    HW = H * W
    itemsize = jnp.dtype(x.dtype).itemsize
    s_dt = _dtype_sublanes(itemsize)

    # Lane-dense spatial factorization of the plane.
    sub, lane = _best_plane_factorization(HW, s_dt)
    lane_pad_bytes = _round_up(lane, 128) * itemsize

    # Spatial tiling when a single (padded) plane exceeds the block budget.
    plane_padded = _round_up(sub, s_dt) * lane_pad_bytes
    if plane_padded > max_block and sub > s_dt:
        st = max(s_dt, (max_block // lane_pad_bytes) // s_dt * s_dt)  # multiple of 8
        st = min(st, sub)
    else:
        st = sub
    s_blocks = _cdiv(sub, st)
    tile_padded = _round_up(st, s_dt) * lane_pad_bytes
    # (lane-dim tiling for gigantic single-row planes is not needed for image inputs)

    # Channels-per-group tile, sized by padded bytes; cdiv grid avoids the divisor
    # collapse for prime cpg.
    jt = max(1, min(cpg, max_block // tile_padded))
    j_blocks = _cdiv(cpg, jt)

    # Batch tile: fill the remaining budget, but keep >= _MIN_PARALLEL_STEPS steps.
    bt = max(1, min(B, max_block // (jt * tile_padded)))
    steps_wo_batch = groups * j_blocks * s_blocks
    if steps_wo_batch < _MIN_PARALLEL_STEPS:
        min_b_blocks = min(B, _cdiv(_MIN_PARALLEL_STEPS, steps_wo_batch))
        bt = max(1, min(bt, B // min_b_blocks))
    b_blocks = _cdiv(B, bt)

    # Batch (usually the largest parallel axis) leads; all axes are parallel since
    # every grid step writes a distinct output block.
    grid = (b_blocks, groups, j_blocks, s_blocks)

    x_v = x.reshape(B, groups, cpg, sub, lane)  # free contiguous view of NCHW

    in_spec = pl.BlockSpec(
        (bt, None, jt, st, lane),               # kernel sees (bt, jt, st, lane)
        lambda b, g, j, s: (b, g, j, s, 0),
    )
    out_spec = pl.BlockSpec(
        (bt, jt, None, st, lane),               # channel scatter done by the out DMA
        lambda b, g, j, s: (b, j, g, s, 0),
    )

    out_v = pl.pallas_call(
        _copy_kernel,
        out_shape=jax.ShapeDtypeStruct((B, cpg, groups, sub, lane), x.dtype),
        grid=grid,
        in_specs=[in_spec],
        out_specs=out_spec,
        compiler_params=pltpu.CompilerParams(
            dimension_semantics=("parallel",) * 4,
            vmem_limit_bytes=vmem_limit,
        ),
        cost_estimate=pl.CostEstimate(
            flops=0, transcendentals=0,
            bytes_accessed=int(2 * x.size * itemsize)),
    )(x_v)

    # (B, cpg, groups, sub, lane) row-major == (B, C, H, W) row-major: free view.
    return out_v.reshape(B, C, H, W)


def channel_shuffle(x: jax.Array, groups: int) -> jax.Array:
    """Channel shuffle on an NCHW tensor, matching the PyTorch ChannelShuffle."""
    B, C, H, W = x.shape
    if C % groups != 0:
        raise ValueError("channels must be divisible by groups")
    cpg = C // groups
    if groups == 1 or cpg == 1:
        return x  # the permutation is the identity

    itemsize = jnp.dtype(x.dtype).itemsize
    s_dt = _dtype_sublanes(itemsize)
    max_block, vmem_limit = _block_budget()

    HW = H * W
    plane_bytes = HW * itemsize
    slab_padded = _round_up(C, s_dt) * _round_up(HW, 128) * itemsize
    if (plane_bytes <= _SMALL_PLANE_BYTES
            and C <= _MAX_UNROLLED_CHANNELS
            and slab_padded <= max_block):
        return _shuffle_small_plane(x, groups, cpg, max_block, vmem_limit)
    return _shuffle_dma_permute(x, groups, cpg, max_block, vmem_limit)


def channel_shuffle_ref(x: jax.Array, groups: int) -> jax.Array:
    """Pure-JAX reference mirroring the PyTorch forward."""
    B, C, H, W = x.shape
    cpg = C // groups
    y = x.reshape(B, groups, cpg, H, W)
    y = jnp.transpose(y, (0, 2, 1, 3, 4))
    return y.reshape(B, C, H, W)


if __name__ == "__main__":
    root = jax.random.PRNGKey(0)
    cases = [
        # (B, C, H,  W,  groups, dtype)
        (2, 4, 16, 16, 2, jnp.float32),   # small plane -> contiguous-slab path
        (2, 6, 7,  7,  3, jnp.float32),   # MicroNet-style 7x7, odd groups -> slab path
        (2, 8, 56, 56, 2, jnp.float32),   # 56x56 -> DMA-permute path, (7, 448) split
        (2, 8, 56, 56, 2, jnp.bfloat16),  # dtype-aware factorization -> (14, 224)
        (2, 4, 67, 67, 2, jnp.float32),   # awkward prime-squared plane -> (67, 67)
    ]
    for i, (B, C, H, W, g, dt) in enumerate(cases):
        x = jax.random.normal(jax.random.fold_in(root, i), (B, C, H, W)).astype(dt)
        out = jax.block_until_ready(channel_shuffle(x, g))
        ref = channel_shuffle_ref(x, g)
        assert out.shape == ref.shape and out.dtype == ref.dtype
        assert jnp.array_equal(out, ref), f"mismatch for case {(B, C, H, W, g, dt)}"
    print("KERNEL_OK")
</pallas_src>

<mosaic_0001>
module attributes {stable_mosaic.version = 11 : i64} {
  func.func @kernel(%arg0: i32, %arg1: memref<1x4x256xf32, #tpu.memory_space<vmem>>, %arg2: memref<1x4x256xf32, #tpu.memory_space<vmem>>) attributes {dimension_semantics = [#tpu.dimension_semantics<parallel>], iteration_bounds = array<i64: 2>, scalar_prefetch = 0 : i64, scratch_operands = 0 : i64, tpu.core_type = #tpu.core_type<tc>, window_params = [{transform_indices = @transform_0, window_bounds = array<i64: 1, 4, 256>}, {transform_indices = @transform_1, window_bounds = array<i64: 1, 4, 256>}]} {
    %c0 = arith.constant 0 : index
    %c0_0 = arith.constant 0 : index
    %c0_1 = arith.constant 0 : index
    %0 = vector.load %arg1[%c0, %c0_0, %c0_1] : memref<1x4x256xf32, #tpu.memory_space<vmem>>, vector<1x1x256xf32>
    %c0_2 = arith.constant 0 : index
    %c0_3 = arith.constant 0 : index
    %c0_4 = arith.constant 0 : index
    %1 = vector.load %arg2[%c0_2, %c0_3, %c0_4] : memref<1x4x256xf32, #tpu.memory_space<vmem>>, vector<1x1x256xf32>
    tpu.vector_store %arg2[%c0_2, %c0_3, %c0_4], %0 {strides = array<i32>} : memref<1x4x256xf32, #tpu.memory_space<vmem>>, vector<1x1x256xf32>,
    %c0_5 = arith.constant 0 : index
    %c2 = arith.constant 2 : index
    %c0_6 = arith.constant 0 : index
    %2 = vector.load %arg1[%c0_5, %c2, %c0_6] : memref<1x4x256xf32, #tpu.memory_space<vmem>>, vector<1x1x256xf32>
    %c0_7 = arith.constant 0 : index
    %c1 = arith.constant 1 : index
    %c0_8 = arith.constant 0 : index
    %3 = vector.load %arg2[%c0_7, %c1, %c0_8] : memref<1x4x256xf32, #tpu.memory_space<vmem>>, vector<1x1x256xf32>
    tpu.vector_store %arg2[%c0_7, %c1, %c0_8], %2 {strides = array<i32>} : memref<1x4x256xf32, #tpu.memory_space<vmem>>, vector<1x1x256xf32>,
    %c0_9 = arith.constant 0 : index
    %c1_10 = arith.constant 1 : index
    %c0_11 = arith.constant 0 : index
    %4 = vector.load %arg1[%c0_9, %c1_10, %c0_11] : memref<1x4x256xf32, #tpu.memory_space<vmem>>, vector<1x1x256xf32>
    %c0_12 = arith.constant 0 : index
    %c2_13 = arith.constant 2 : index
    %c0_14 = arith.constant 0 : index
    %5 = vector.load %arg2[%c0_12, %c2_13, %c0_14] : memref<1x4x256xf32, #tpu.memory_space<vmem>>, vector<1x1x256xf32>
    tpu.vector_store %arg2[%c0_12, %c2_13, %c0_14], %4 {strides = array<i32>} : memref<1x4x256xf32, #tpu.memory_space<vmem>>, vector<1x1x256xf32>,
    %c0_15 = arith.constant 0 : index
    %c3 = arith.constant 3 : index
    %c0_16 = arith.constant 0 : index
    %6 = vector.load %arg1[%c0_15, %c3, %c0_16] : memref<1x4x256xf32, #tpu.memory_space<vmem>>, vector<1x1x256xf32>
    %c0_17 = arith.constant 0 : index
    %c3_18 = arith.constant 3 : index
    %c0_19 = arith.constant 0 : index
    %7 = vector.load %arg2[%c0_17, %c3_18, %c0_19] : memref<1x4x256xf32, #tpu.memory_space<vmem>>, vector<1x1x256xf32>
    tpu.vector_store %arg2[%c0_17, %c3_18, %c0_19], %6 {strides = array<i32>} : memref<1x4x256xf32, #tpu.memory_space<vmem>>, vector<1x1x256xf32>,
    return
  }
  func.func @transform_0(%arg0: i32) -> (i32, i32, i32) {
    %c0_i32 = arith.constant 0 : i32
    %c0_i32_0 = arith.constant 0 : i32
    %c0_i32_1 = arith.constant 0 : i32
    return %arg0, %c0_i32, %c0_i32_0 : i32, i32, i32
  }
  func.func @transform_1(%arg0: i32) -> (i32, i32, i32) {
    %c0_i32 = arith.constant 0 : i32
    %c0_i32_0 = arith.constant 0 : i32
    %c0_i32_1 = arith.constant 0 : i32
    return %arg0, %c0_i32, %c0_i32_0 : i32, i32, i32
  }
}

</mosaic_0001>

<llo_original>
// kernel: tpu_custom_call.1
$region0: #{tpu_custom_call.1}
  #allocation0 [shape = 'u32[]', space=smem, size = 0x4, offset = 0x4, fixed_abs, tag = 'smem constant byte address 0x4 - core index']
  #allocation1 [shape = 'u32[72,128]{1,0:T(1,128)}', space=vmem, size = 0x9000, scoped, tag = 'internal scratch']
  %s0 = inlined_call_operand.hbm [shape: f32[2,4,256], index: 0, kind: input, shape index: {}]
  %s1 = inlined_call_operand.hbm [shape: f32[2,4,256], index: 1, kind: output, shape index: {}]
  %s2 = sld [smem:[#allocation0]]
  $region41: #{tpu_custom_call.1} parent=0
    _
  %s4 = ssub.s32 1, %s2
  %s5 = scalar_select 0, %s4, %s2
  $region1: #{tpu_custom_call.1} parent=0
    #allocation2 [shape = 'u8[8192]{0}', space=vmem, size = 0x2000, scoped, tag = 'input window, operand 0']
    #allocation3 [shape = 's32[2]{0}', space=sflag, size = 0x8, scoped, tag = 'scoped memory for tpu_custom_call.1']
    #allocation4 [shape = 's32[2]{0}', space=sflag, size = 0x8, scoped, tag = 'scoped memory for tpu_custom_call.1']
    #allocation5 [shape = 'u8[8192]{0}', space=vmem, size = 0x2000, scoped, tag = 'output window, operand 0']
    %6 = vsyncpa [#allocation3], 0
    %s7 = scalar_lea.sflag [#allocation3], 1
    %8 = vsyncpa %s7, 0
    %9 = vsyncpa [#allocation4], 0
    %s10 = scalar_lea.sflag [#allocation4], 1
    %11 = vsyncpa %s10, 0
    loop: start=0, step=1, limit=4
    $region2: #{tpu_custom_call.1} parent=1 // loop_pre_header
      _
    $region3: #{tpu_custom_call.1} parent=1 // loop_header
      %s13 = sphi 0, %s17
      %p14 = scmp.ge.s32.totalorder %s13, 4
      %s23 = sphi 0, %s25
      %s26 = sphi 0, %s23
      %s27 = sphi 0, %s26
      %s43 = sphi 0, %s27
      %s49 = sphi 0, %s51
      %s52 = sphi 0, %s49
      %s53 = sphi 0, %s52
      %s69 = sphi 0, %s53
    $region4: #{tpu_custom_call.1} parent=1 // loop_header_branch
      %16 = sbr.rel (%p14) target = $region8
    $region5: #{tpu_custom_call.1} parent=1 // loop_body
      %s18 = ssub.s32 %s13, 1
      %s19 = ssub.s32 %s13, 2
      %s20 = sadd.s32 %s13, 1
      %s21 = ssub.s32 %s13, %s20
      %p22 = scmp.eq.s32.totalorder %s21, 0
      %s24 = sadd.s32 %s23, 1
      %s25 = scalar_select %p22, %s23, %s24
      %p28 = pneg %p22
      %p29 = scmp.eq.s32.totalorder %s13, 1
      %p30 = por %p28, %p29
      %p31 = scmp.ne.s32.totalorder %s23, %s26
      %p32 = scmp.eq.s32.totalorder %s13, 0
      %p33 = por %p31, %p32
      %p34 = scmp.ne.s32.totalorder %s23, %s26
      %p35 = scmp.eq.s32.totalorder %s18, 1
      %p36 = por %p34, %p35
      %p37 = scmp.ne.s32.totalorder %s26, %s27
      %p38 = scmp.eq.s32.totalorder %s18, 0
      %p39 = por %p37, %p38
      %p40 = scmp.ne.s32.totalorder %s26, %s27
      %p41 = scmp.eq.s32.totalorder %s19, 1
      %p42 = por %p40, %p41
      %p44 = scmp.ne.s32.totalorder %s27, %s43
      %p45 = scmp.eq.s32.totalorder %s19, 0
      %p46 = por %p44, %p45
      %s47 = ssub.s32 %s13, %s20
      %p48 = scmp.eq.s32.totalorder %s47, 0
      %s50 = sadd.s32 %s49, 1
      %s51 = scalar_select %p48, %s49, %s50
      %p54 = pneg %p48
      %p55 = scmp.eq.s32.totalorder %s13, 1
      %p56 = por %p54, %p55
      %p57 = scmp.ne.s32.totalorder %s49, %s52
      %p58 = scmp.eq.s32.totalorder %s13, 0
      %p59 = por %p57, %p58
      %p60 = scmp.ne.s32.totalorder %s49, %s52
      %p61 = scmp.eq.s32.totalorder %s18, 1
      %p62 = por %p60, %p61
      %p63 = scmp.ne.s32.totalorder %s52, %s53
      %p64 = scmp.eq.s32.totalorder %s18, 0
      %p65 = por %p63, %p64
      %p66 = scmp.ne.s32.totalorder %s52, %s53
      %p67 = scmp.eq.s32.totalorder %s19, 1
      %p68 = por %p66, %p67
      %p70 = scmp.ne.s32.totalorder %s53, %s69
      %p71 = scmp.eq.s32.totalorder %s19, 0
      %p72 = por %p70, %p71
      %p73 = scmp.le.s32.totalorder 1, %s13
      %p74 = scmp.lt.s32.totalorder %s13, 3
      %p75 = pnand %p73, %p74
      %p76 = pneg %p75
      // Predicated region
      $region9: #{tpu_custom_call.1} parent=5 // pred_check
        _
      $region10: #{tpu_custom_call.1} parent=5 // pred_check_branch
        %78 = sbr.rel (%p75) target = $region12
      $region11: #{tpu_custom_call.1} parent=5 // pred_region
        %s79 = ssub.s32 %s13, 1
      $region12: #{tpu_custom_call.1} parent=5 // pred_fallthru
        _
      %p80 = scmp.lt.s32.totalorder %s13, 2
      // Predicated region
      $region13: #{tpu_custom_call.1} parent=5 // pred_check
        %p81 = pneg %p80
      $region14: #{tpu_custom_call.1} parent=5 // pred_check_branch
        %83 = sbr.rel (%p81) target = $region16
      $region15: #{tpu_custom_call.1} parent=5 // pred_region
        // Predicated region
        $region17: #{tpu_custom_call.1} parent=15 // pred_check
          %p84 = pneg %p33
        $region18: #{tpu_custom_call.1} parent=15 // pred_check_branch
          %86 = sbr.rel (%p84) target = $region20
        $region19: #{tpu_custom_call.1} parent=15 // pred_region
          %s87 = sand.u32 %s23, 1
          %s88 = scalar_lea.sflag [#allocation3], %s87
          %s89 = sand.u32 %s23, 1
          %s90 = smul.addr %s89, 8
          %s91 = scalar_lea.vmem [#allocation2], %s90
          %93 = vsyncadd %s88, 0
          %s94 = smul.addr %s13, 2
          %s95 = smul.addr %s94, 4
          %s96 = scalar_lea.hbm %s0, %s95
          %s98 = sshll.u32 %s96, 4
          %s99 = int_to_ptr.hbm [resolvable:$true] %s98
          %s100 = sshll.u32 %s91, 4
          %s101 = int_to_ptr.vmem [resolvable:$true] %s100
          %103 = dma.hbm_to_vmem [thread:$0]  %s99, 128, %s101, %s88
        $region20: #{tpu_custom_call.1} parent=15 // pred_fallthru
          _
      $region16: #{tpu_custom_call.1} parent=5 // pred_fallthru
        _
      %p104 = scmp.le.s32.totalorder 1, %s13
      %p105 = scmp.lt.s32.totalorder %s13, 3
      %p106 = pnand %p104, %p105
      %p107 = pneg %p106
      // Predicated region
      $region21: #{tpu_custom_call.1} parent=5 // pred_check
        _
      $region22: #{tpu_custom_call.1} parent=5 // pred_check_branch
        %109 = sbr.rel (%p106) target = $region24
      $region23: #{tpu_custom_call.1} parent=5 // pred_region
        %s110 = ssub.s32 %s13, 1
        %s111 = sand.u32 %s26, 1
        %s112 = scalar_lea.sflag [#allocation3], %s111
        %s113 = sand.u32 %s26, 1
        %s114 = smul.addr %s113, 8
        %s115 = scalar_lea.vmem [#allocation2], %s114
        // Predicated region
        $region25: #{tpu_custom_call.1} parent=23 // pred_check
          %p116 = pneg %p39
        $region26: #{tpu_custom_call.1} parent=23 // pred_check_branch
          %118 = sbr.rel (%p116) target = $region28
        $region27: #{tpu_custom_call.1} parent=23 // pred_region
          %120 = dma.done %s112, 128
        $region28: #{tpu_custom_call.1} parent=23 // pred_fallthru
          _
        %s121 = sand.u32 %s26, 1
        %s122 = scalar_lea.sflag [#allocation3], %s121
        %s123 = sand.u32 %s26, 1
        %s124 = smul.addr %s123, 8
        %s125 = scalar_lea.vmem [#allocation2], %s124
        %p126 = pneg %p39
        %p127 = pneg %p36
        %p128 = pneg %p65
        %p129 = pneg %p62
        %s130 = sand.u32 %s52, 1
        %s131 = scalar_lea.sflag [#allocation4], %s130
        %s132 = sand.u32 %s52, 1
        %s133 = smul.addr %s132, 8
        %s134 = scalar_lea.vmem [#allocation5], %s133
        %v135 = vld [vmem:[%s115] ss:$4 sm:$0x3]
        %v136 = vlaneseq
        %vm137 = vcmp.ge.s32.totalorder %v136, 0
        %vm138 = vcmp.lt.s32.totalorder %v136, 256
        %vm139 = vmand %vm137, %vm138
        %140 = vst.msk [vmem:[%s134] ss:$4 sm:$0x3] %vm139, %v135
        %s141 = scalar_lea.vmem %s115, 2 [#allocation2]
        %v142 = vld [vmem:[%s141] ss:$4 sm:$0x3]
        %s143 = scalar_lea.vmem %s134, 1 [#allocation5]
        %144 = vst.msk [vmem:[%s143] ss:$4 sm:$0x3] %vm139, %v142
        %s145 = scalar_lea.vmem %s115, 1 [#allocation2]
        %v146 = vld [vmem:[%s145] ss:$4 sm:$0x3]
        %s147 = scalar_lea.vmem %s134, 2 [#allocation5]
        %148 = vst.msk [vmem:[%s147] ss:$4 sm:$0x3] %vm139, %v146
        %s149 = scalar_lea.vmem %s115, 3 [#allocation2]
        %v150 = vld [vmem:[%s149] ss:$4 sm:$0x3]
        %s151 = scalar_lea.vmem %s134, 3 [#allocation5]
        %152 = vst.msk [vmem:[%s151] ss:$4 sm:$0x3] %vm139, %v150
        %s153 = sand.u32 %s52, 1
        %s154 = scalar_lea.sflag [#allocation4], %s153
        %s155 = sand.u32 %s52, 1
        %s156 = smul.addr %s155, 8
        %s157 = scalar_lea.vmem [#allocation5], %s156
        // Predicated region
        $region29: #{tpu_custom_call.1} parent=23 // pred_check
          %p158 = pneg %p62
        $region30: #{tpu_custom_call.1} parent=23 // pred_check_branch
          %160 = sbr.rel (%p158) target = $region32
        $region31: #{tpu_custom_call.1} parent=23 // pred_region
          %162 = vsyncadd %s154, 0
          %s163 = smul.addr %s18, 2
          %s164 = smul.addr %s163, 4
          %s165 = scalar_lea.hbm %s1, %s164
          %s167 = sshll.u32 %s157, 4
          %s168 = int_to_ptr.vmem [resolvable:$true] %s167
          %s169 = sshll.u32 %s165, 4
          %s170 = int_to_ptr.hbm [resolvable:$true] %s169
          %172 = dma.vmem_to_hbm [thread:$0]  %s168, 128, %s170, %s154
        $region32: #{tpu_custom_call.1} parent=23 // pred_fallthru
          _
      $region24: #{tpu_custom_call.1} parent=5 // pred_fallthru
        _
      %p173 = scmp.le.s32.totalorder 2, %s13
      // Predicated region
      $region33: #{tpu_custom_call.1} parent=5 // pred_check
        %p174 = pneg %p173
      $region34: #{tpu_custom_call.1} parent=5 // pred_check_branch
        %176 = sbr.rel (%p174) target = $region36
      $region35: #{tpu_custom_call.1} parent=5 // pred_region
        %s177 = ssub.s32 %s13, 2
        // Predicated region
        $region37: #{tpu_custom_call.1} parent=35 // pred_check
          %p178 = pneg %p68
        $region38: #{tpu_custom_call.1} parent=35 // pred_check_branch
          %180 = sbr.rel (%p178) target = $region40
        $region39: #{tpu_custom_call.1} parent=35 // pred_region
          %s181 = sand.u32 %s53, 1
          %s182 = scalar_lea.sflag [#allocation4], %s181
          %s183 = sand.u32 %s53, 1
          %s184 = smul.addr %s183, 8
          %s185 = scalar_lea.vmem [#allocation5], %s184
          %187 = dma.done %s182, 128
        $region40: #{tpu_custom_call.1} parent=35 // pred_fallthru
          _
      $region36: #{tpu_custom_call.1} parent=5 // pred_fallthru
        _
    $region6: #{tpu_custom_call.1} parent=1 // loop_footer
      %s17 = sadd.s32 1, %s13
    $region7: #{tpu_custom_call.1} parent=1 // loop_footer_branch
      %12 = sbr.rel target = $region3
    $region8: #{tpu_custom_call.1} parent=1 // loop_exit
      _
    %188 = vsyncpa [#allocation3], 1
    %s189 = scalar_lea.sflag [#allocation3], 1
    %190 = vsyncpa %s189, 1
    %191 = vsyncpa [#allocation4], 1
    %s192 = scalar_lea.sflag [#allocation4], 1
    %193 = vsyncpa %s192, 1

</llo_original>
